<compile_context>
chip_gen: v7x
topology: tpu7x:2x2x1
jax: 0.10.0
libtpu: 0.0.40
codegen_flags: <defaults>
</compile_context>

<pallas_src>
import functools

import jax
import jax.numpy as jnp
import numpy as np
from jax import lax
from jax.experimental import pallas as pl
from jax.experimental.pallas import tpu as pltpu

LN_EPS = 1e-5  # PyTorch nn.LayerNorm default eps


def _round_up(x, m):
    return (x + m - 1) // m * m


# --------------------------------------------------------------------------
# SE branch: AdaptiveAvgPool(1) -> 1x1 conv -> LN -> ReLU -> 1x1 conv -> LN
# -> sigmoid.  One tiny Pallas call per forward (hoisted off the hot path).
# --------------------------------------------------------------------------
def _se_kernel(x_ref, w1_ref, w2_ref, vec_ref, se_ref, *, cmid, cout):
    pooled = jnp.mean(x_ref[0].astype(jnp.float32), axis=0, keepdims=True)   # (1, Cin)

    h1 = jnp.dot(pooled, w1_ref[...].astype(jnp.float32),
                 preferred_element_type=jnp.float32) + vec_ref[0:1, :cmid]
    mu = jnp.mean(h1, axis=-1, keepdims=True)
    var = jnp.mean((h1 - mu) ** 2, axis=-1, keepdims=True)
    h1 = (h1 - mu) / jnp.sqrt(var + LN_EPS) * vec_ref[1:2, :cmid] + vec_ref[2:3, :cmid]
    h1 = jnp.maximum(h1, 0.0)

    h2 = jnp.dot(h1, w2_ref[...].astype(jnp.float32),
                 preferred_element_type=jnp.float32) + vec_ref[3:4, :cout]
    mu = jnp.mean(h2, axis=-1, keepdims=True)
    var = jnp.mean((h2 - mu) ** 2, axis=-1, keepdims=True)
    h2 = (h2 - mu) / jnp.sqrt(var + LN_EPS) * vec_ref[4:5, :cout] + vec_ref[5:6, :cout]

    # numerically-stable sigmoid (exp argument is always <= 0)
    pos = 1.0 / (1.0 + jnp.exp(-jnp.abs(h2)))
    se_ref[0] = jnp.where(h2 >= 0.0, pos, 1.0 - pos)


def _se_weights(x_flat, w1, w2, vecs, cmid, cout):
    N, HW, Cin = x_flat.shape
    kern = functools.partial(_se_kernel, cmid=cmid, cout=cout)
    se = pl.pallas_call(
        kern,
        out_shape=jax.ShapeDtypeStruct((N, 1, cout), jnp.float32),
        grid_spec=pltpu.PrefetchScalarGridSpec(
            num_scalar_prefetch=0,
            grid=(N,),
            in_specs=[
                pl.BlockSpec((1, HW, Cin), lambda n: (n, 0, 0)),
                pl.BlockSpec((Cin, cmid), lambda n: (0, 0)),
                pl.BlockSpec((cmid, cout), lambda n: (0, 0)),
                pl.BlockSpec((6, vecs.shape[1]), lambda n: (0, 0)),
            ],
            out_specs=pl.BlockSpec((1, 1, cout), lambda n: (n, 0, 0)),
        ),
        compiler_params=pltpu.CompilerParams(dimension_semantics=("parallel",)),
    )(x_flat, w1, w2, vecs)
    return se[:, 0, :]                                                       # (N, Cout)


# --------------------------------------------------------------------------
# Main op.
# --------------------------------------------------------------------------
def se_conv_transpose2d(x, params, kernel_size, stride, padding,
                        compute_dtype=jnp.bfloat16):
    N, Cin, H, W = x.shape
    kH = kW = int(kernel_size)
    s, p = int(stride), int(padding)
    Cout = int(params["bias"].shape[0])
    Cmid = int(params["b1"].shape[0])
    out_dtype = x.dtype

    # weight_norm(dim=None): w = g * v / ||v||_F  (g is a scalar)
    v, g = params["v"], params["g"]
    w = (g * v / jnp.sqrt(jnp.sum(v * v))).astype(jnp.float32)               # (Cin,Cout,kH,kW)

    Hout = (H - 1) * s - 2 * p + kH
    Wout = (W - 1) * s - 2 * p + kW

    # ---- static phase / tap bookkeeping (pure Python ints) ----
    OH = -(-Hout // s)                       # per-phase output rows
    OW = -(-Wout // s)                       # per-phase output cols
    OWp = _round_up(OW, 8)                   # sublane-aligned per-phase width
    M = OH * OWp

    def taps_1d(r, k):
        ks = [ki for ki in range(k) if ki % s == r % s]
        o0 = (r - p) % s
        return [(ki, (o0 + p - ki) // s) for ki in ks]

    y_taps = [taps_1d(ry, kH) for ry in range(s)]
    x_taps = [taps_1d(rx, kW) for rx in range(s)]
    phases = []
    for ry in range(s):
        for rx in range(s):
            phases.append([(ky, kx, by, bx)
                           for (ky, by) in y_taps[ry] for (kx, bx) in x_taps[rx]])
    n_phases = s * s
    T_max = max(1, max(len(t) for t in phases))

    all_by = [by for taps in phases for (_, _, by, _) in taps] or [0]
    all_bx = [bx for taps in phases for (_, _, _, bx) in taps] or [0]
    pad_t = max(0, -min(all_by))
    pad_b = max(0, max(all_by) + OH - H)
    pad_l = max(0, -min(all_bx))
    pad_r = max(0, max(all_bx) + OWp - W)
    Hpad, Wpad = H + pad_t + pad_b, W + pad_l + pad_r

    # ---- operands ----
    x_nhwc = jnp.transpose(x, (0, 2, 3, 1))                                  # (N, H, W, Cin)
    x_pad = jnp.pad(x_nhwc, ((0, 0), (pad_t, pad_b), (pad_l, pad_r), (0, 0)))
    x_pad = x_pad.astype(compute_dtype)

    Cout_p = _round_up(Cout, 128)                                            # lane-dense out

    ky_idx = np.zeros((n_phases, T_max), np.int32)
    kx_idx = np.zeros((n_phases, T_max), np.int32)
    tmask = np.zeros((n_phases, T_max), np.float32)
    tap_by = np.zeros((n_phases, T_max), np.int32)
    tap_bx = np.zeros((n_phases, T_max), np.int32)
    for pi, taps in enumerate(phases):
        for ti, (ky, kx, by, bx) in enumerate(taps):
            ky_idx[pi, ti] = ky
            kx_idx[pi, ti] = kx
            tmask[pi, ti] = 1.0
            tap_by[pi, ti] = by + pad_t
            tap_bx[pi, ti] = bx + pad_l

    w_sel = w[:, :, ky_idx, kx_idx]                                          # (Cin,Cout,P,T)
    w_sel = jnp.transpose(w_sel, (2, 3, 0, 1)) * tmask[:, :, None, None]     # (P,T,Cin,Cout)
    w_taps = jnp.pad(w_sel, ((0, 0), (0, 0), (0, 0), (0, Cout_p - Cout)))
    w_taps = w_taps.astype(compute_dtype)
    tap_by = jnp.asarray(tap_by)
    tap_bx = jnp.asarray(tap_bx)

    # ---- SE branch once per forward; fold conv bias into scale/shift ----
    x_flat = x_nhwc.reshape(N, H * W, Cin).astype(jnp.float32)
    Lmax = max(Cmid, Cout)
    vecs = jnp.zeros((6, Lmax), jnp.float32)
    vecs = vecs.at[0, :Cmid].set(params["b1"])
    vecs = vecs.at[1, :Cmid].set(params["ln1_g"])
    vecs = vecs.at[2, :Cmid].set(params["ln1_b"])
    vecs = vecs.at[3, :Cout].set(params["b2"])
    vecs = vecs.at[4, :Cout].set(params["ln2_g"])
    vecs = vecs.at[5, :Cout].set(params["ln2_b"])
    se = _se_weights(x_flat, params["w1"].astype(jnp.float32),
                     params["w2"].astype(jnp.float32), vecs, Cmid, Cout)     # (N, Cout)

    # out = conv(x)*se + bias*se
    scale = jnp.pad(se, ((0, 0), (0, Cout_p - Cout))).reshape(N, 1, Cout_p)
    shift = jnp.pad(se * params["bias"][None, :].astype(jnp.float32),
                    ((0, 0), (0, Cout_p - Cout))).reshape(N, 1, Cout_p)

    # ---- main kernel: per-(phase, sample) accumulation over the taps ----
    def conv_phase_kernel(tap_by_ref, tap_bx_ref, x_ref, w_ref, sc_ref, sh_ref, o_ref):
        ph = pl.program_id(0)
        acc = jnp.zeros((M, Cout_p), jnp.float32)
        for t in range(T_max):                       # short static tap loop (unrolled)
            by = tap_by_ref[ph, t]
            bx = tap_bx_ref[ph, t]
            slab = x_ref[0, pl.ds(by, OH), pl.ds(bx, OWp), :]                # (OH, OWp, Cin)
            acc = acc + jnp.dot(slab.reshape(M, Cin), w_ref[0, t],
                                preferred_element_type=jnp.float32)
        o_ref[0, 0] = (acc * sc_ref[0] + sh_ref[0]).astype(o_ref.dtype)

    itemsize = np.dtype(compute_dtype).itemsize
    out_itemsize = np.dtype(out_dtype).itemsize
    est = (2 * (Hpad * Wpad * Cin * itemsize                                 # x block (2x)
                + T_max * Cin * Cout_p * itemsize                            # tap weights (2x)
                + 2 * Cout_p * 4)                                            # scale/shift
           + 2 * M * Cout_p * out_itemsize                                   # out block (2x)
           + M * Cout_p * 4                                                  # f32 accumulator
           + (1 << 20))
    vmem_limit = int(min(max(est, 16 * (1 << 20)), 48 * (1 << 20)))

    phase_out = pl.pallas_call(
        conv_phase_kernel,
        out_shape=jax.ShapeDtypeStruct((n_phases, N, M, Cout_p), out_dtype),
        grid_spec=pltpu.PrefetchScalarGridSpec(
            num_scalar_prefetch=2,                    # tap_by, tap_bx -> SMEM
            grid=(n_phases, N),                       # phase outer -> weights stay resident
            in_specs=[
                pl.BlockSpec((1, Hpad, Wpad, Cin), lambda ph, n, *_: (n, 0, 0, 0)),
                pl.BlockSpec((1, T_max, Cin, Cout_p), lambda ph, n, *_: (ph, 0, 0, 0)),
                pl.BlockSpec((1, 1, Cout_p), lambda ph, n, *_: (n, 0, 0)),
                pl.BlockSpec((1, 1, Cout_p), lambda ph, n, *_: (n, 0, 0)),
            ],
            out_specs=pl.BlockSpec((1, 1, M, Cout_p), lambda ph, n, *_: (ph, n, 0, 0)),
        ),
        compiler_params=pltpu.CompilerParams(
            dimension_semantics=("parallel", "parallel"),
            vmem_limit_bytes=vmem_limit),
    )(tap_by, tap_bx, x_pad, w_taps, scale, shift)

    # ---- interleave phases back into (N, Cout, Hout, Wout) -- thin JAX glue ----
    po = phase_out.reshape(s, s, N, OH, OWp, Cout_p)[:, :, :, :, :OW, :Cout]
    order = np.array([(r + p) % s for r in range(s)], dtype=np.int32)
    po = po[order][:, order]                          # phase index -> output parity
    full = jnp.transpose(po, (2, 3, 0, 4, 1, 5))      # (N, OH, s, OW, s, Cout)
    full = full.reshape(N, OH * s, OW * s, Cout)[:, :Hout, :Wout, :]
    return jnp.transpose(full, (0, 3, 1, 2))


# --------------------------------------------------------------------------
# Pure-JAX reference mirroring PyTorch semantics.
# --------------------------------------------------------------------------
def ref_forward(x, params, kernel_size, stride, padding):
    v, g = params["v"], params["g"]
    w = g * v / jnp.sqrt(jnp.sum(v * v))
    kH = kW = kernel_size
    s, p = stride, padding
    y = lax.conv_general_dilated(
        x, jnp.transpose(w[:, :, ::-1, ::-1], (1, 0, 2, 3)),
        window_strides=(1, 1),
        padding=[(kH - 1 - p, kH - 1 - p), (kW - 1 - p, kW - 1 - p)],
        lhs_dilation=(s, s),
        dimension_numbers=("NCHW", "OIHW", "NCHW"))
    y = y + params["bias"][None, :, None, None]

    pooled = x.mean(axis=(2, 3))                                             # (N, Cin)
    h1 = pooled @ params["w1"] + params["b1"]
    mu = h1.mean(-1, keepdims=True)
    var = ((h1 - mu) ** 2).mean(-1, keepdims=True)
    h1 = (h1 - mu) / jnp.sqrt(var + LN_EPS) * params["ln1_g"] + params["ln1_b"]
    h1 = jnp.maximum(h1, 0.0)
    h2 = h1 @ params["w2"] + params["b2"]
    mu = h2.mean(-1, keepdims=True)
    var = ((h2 - mu) ** 2).mean(-1, keepdims=True)
    h2 = (h2 - mu) / jnp.sqrt(var + LN_EPS) * params["ln2_g"] + params["ln2_b"]
    se = jax.nn.sigmoid(h2)
    return y * se[:, :, None, None]


def make_params(key, inc, outc, k):
    cmid = max(1, inc // 4)
    ks = jax.random.split(key, 11)
    params = {
        "v": 0.1 * jax.random.normal(ks[0], (inc, outc, k, k), jnp.float32),
        "g": jnp.float32(1.5),
        "bias": 0.1 * jax.random.normal(ks[1], (outc,), jnp.float32),
        "w1": 0.2 * jax.random.normal(ks[2], (inc, cmid), jnp.float32),
        "b1": 0.1 * jax.random.normal(ks[3], (cmid,), jnp.float32),
        "ln1_g": jnp.ones((cmid,), jnp.float32) + 0.1 * jax.random.normal(ks[4], (cmid,), jnp.float32),
        "ln1_b": 0.1 * jax.random.normal(ks[5], (cmid,), jnp.float32),
        "w2": 0.2 * jax.random.normal(ks[6], (cmid, outc), jnp.float32),
        "b2": 0.1 * jax.random.normal(ks[7], (outc,), jnp.float32),
        "ln2_g": jnp.ones((outc,), jnp.float32) + 0.1 * jax.random.normal(ks[8], (outc,), jnp.float32),
        "ln2_b": 0.1 * jax.random.normal(ks[9], (outc,), jnp.float32),
    }
    return params, ks[10]


if __name__ == "__main__":
    key = jax.random.PRNGKey(0)
    k1, k2 = jax.random.split(key)

    # ---- config 1: standard DCGAN upsampling block (k=4, s=2, p=1) ----
    inc, outc, ksz, s, p = 8, 8, 4, 2, 1
    N, H, W = 2, 8, 8
    params, kx = make_params(k1, inc, outc, ksz)
    x = jax.random.normal(kx, (N, inc, H, W), jnp.float32)
    ref = ref_forward(x, params, ksz, s, p)

    out_f32 = se_conv_transpose2d(x, params, ksz, s, p, compute_dtype=jnp.float32)
    out_f32 = jax.block_until_ready(out_f32)
    np.testing.assert_allclose(np.asarray(out_f32), np.asarray(ref), rtol=1e-4, atol=1e-4)

    out_bf16 = se_conv_transpose2d(x, params, ksz, s, p, compute_dtype=jnp.bfloat16)
    out_bf16 = jax.block_until_ready(out_bf16)
    np.testing.assert_allclose(np.asarray(out_bf16), np.asarray(ref), rtol=2e-2, atol=2e-2)

    # ---- config 2: DCGAN first-layer style (k=4, s=1, p=0), batch 1 ----
    inc2, outc2, ksz2, s2, p2 = 8, 8, 4, 1, 0
    N2, H2, W2 = 1, 4, 4
    params2, kx2 = make_params(k2, inc2, outc2, ksz2)
    x2 = jax.random.normal(kx2, (N2, inc2, H2, W2), jnp.float32)
    ref2 = ref_forward(x2, params2, ksz2, s2, p2)

    out2 = se_conv_transpose2d(x2, params2, ksz2, s2, p2, compute_dtype=jnp.float32)
    out2 = jax.block_until_ready(out2)
    np.testing.assert_allclose(np.asarray(out2), np.asarray(ref2), rtol=1e-4, atol=1e-4)

    print("KERNEL_OK")
</pallas_src>

<mosaic_0001>
module attributes {stable_mosaic.version = 11 : i64} {
  func.func @_se_kernel(%arg0: i32, %arg1: memref<1x64x8xf32, #tpu.memory_space<vmem>>, %arg2: memref<8x2xf32, #tpu.memory_space<vmem>>, %arg3: memref<2x8xf32, #tpu.memory_space<vmem>>, %arg4: memref<6x8xf32, #tpu.memory_space<vmem>>, %arg5: memref<1x1x8xf32, #tpu.memory_space<vmem>>) attributes {dimension_semantics = [#tpu.dimension_semantics<parallel>], iteration_bounds = array<i64: 2>, scalar_prefetch = 0 : i64, scratch_operands = 0 : i64, tpu.core_type = #tpu.core_type<tc>, window_params = [{transform_indices = @transform_0, window_bounds = array<i64: 1, 64, 8>}, {pipeline_mode = #tpu.pipeline_mode<synchronous>, transform_indices = @transform_1, window_bounds = array<i64: 8, 2>}, {pipeline_mode = #tpu.pipeline_mode<synchronous>, transform_indices = @transform_2, window_bounds = array<i64: 2, 8>}, {pipeline_mode = #tpu.pipeline_mode<synchronous>, transform_indices = @transform_3, window_bounds = array<i64: 6, 8>}, {transform_indices = @transform_4, window_bounds = array<i64: 1, 1, 8>}]} {
    %c0 = arith.constant 0 : index
    %c0_0 = arith.constant 0 : index
    %c0_1 = arith.constant 0 : index
    %0 = vector.load %arg1[%c0, %c0_0, %c0_1] : memref<1x64x8xf32, #tpu.memory_space<vmem>>, vector<1x64x8xf32>
    %1 = vector.shape_cast %0 : vector<1x64x8xf32> to vector<64x8xf32>
    %cst = arith.constant dense<0.000000e+00> : vector<8xf32>
    %2 = vector.multi_reduction <add>, %1, %cst [0] : vector<64x8xf32> to vector<8xf32>
    %3 = vector.shape_cast %2 : vector<8xf32> to vector<1x8xf32>
    %cst_2 = arith.constant 6.400000e+01 : f32
    %4 = vector.broadcast %cst_2 : f32 to vector<1x8xf32>
    %5 = arith.divf %3, %4 : vector<1x8xf32>
    %c0_3 = arith.constant 0 : index
    %c0_4 = arith.constant 0 : index
    %6 = vector.load %arg2[%c0_3, %c0_4] : memref<8x2xf32, #tpu.memory_space<vmem>>, vector<8x2xf32>
    %cst_5 = arith.constant dense<0.000000e+00> : vector<1x2xf32>
    %7 = tpu.matmul %5, %6, %cst_5 {dimension_numbers = #tpu.dot_dimension_numbers<[1], [0], [0], [1], [0, 0, 1, 1], [], []>} : vector<1x8xf32>, vector<8x2xf32>, vector<1x2xf32> -> vector<1x2xf32>
    %c0_6 = arith.constant 0 : index
    %c0_7 = arith.constant 0 : index
    %8 = vector.load %arg4[%c0_6, %c0_7] : memref<6x8xf32, #tpu.memory_space<vmem>>, vector<1x2xf32>
    %9 = arith.addf %7, %8 : vector<1x2xf32>
    %cst_8 = arith.constant dense<0.000000e+00> : vector<1xf32>
    %10 = vector.multi_reduction <add>, %9, %cst_8 [1] : vector<1x2xf32> to vector<1xf32>
    %11 = vector.shape_cast %10 : vector<1xf32> to vector<1x1xf32>
    %cst_9 = arith.constant 2.000000e+00 : f32
    %12 = vector.broadcast %cst_9 : f32 to vector<1x1xf32>
    %13 = arith.divf %11, %12 : vector<1x1xf32>
    %14 = vector.broadcast %13 : vector<1x1xf32> to vector<1x2xf32>
    %15 = arith.subf %9, %14 : vector<1x2xf32>
    %16 = arith.mulf %15, %15 : vector<1x2xf32>
    %cst_10 = arith.constant dense<0.000000e+00> : vector<1xf32>
    %17 = vector.multi_reduction <add>, %16, %cst_10 [1] : vector<1x2xf32> to vector<1xf32>
    %18 = vector.shape_cast %17 : vector<1xf32> to vector<1x1xf32>
    %cst_11 = arith.constant 2.000000e+00 : f32
    %19 = vector.broadcast %cst_11 : f32 to vector<1x1xf32>
    %20 = arith.divf %18, %19 : vector<1x1xf32>
    %21 = vector.broadcast %13 : vector<1x1xf32> to vector<1x2xf32>
    %22 = arith.subf %9, %21 : vector<1x2xf32>
    %cst_12 = arith.constant 9.99999974E-6 : f32
    %23 = vector.broadcast %cst_12 : f32 to vector<1x1xf32>
    %24 = arith.addf %20, %23 : vector<1x1xf32>
    %25 = math.sqrt %24 : vector<1x1xf32>
    %26 = vector.broadcast %25 : vector<1x1xf32> to vector<1x2xf32>
    %27 = arith.divf %22, %26 : vector<1x2xf32>
    %c1 = arith.constant 1 : index
    %c0_13 = arith.constant 0 : index
    %28 = vector.load %arg4[%c1, %c0_13] : memref<6x8xf32, #tpu.memory_space<vmem>>, vector<1x2xf32>
    %29 = arith.mulf %27, %28 : vector<1x2xf32>
    %c2 = arith.constant 2 : index
    %c0_14 = arith.constant 0 : index
    %30 = vector.load %arg4[%c2, %c0_14] : memref<6x8xf32, #tpu.memory_space<vmem>>, vector<1x2xf32>
    %31 = arith.addf %29, %30 : vector<1x2xf32>
    %cst_15 = arith.constant 0.000000e+00 : f32
    %32 = vector.broadcast %cst_15 : f32 to vector<1x2xf32>
    %33 = arith.maximumf %31, %32 : vector<1x2xf32>
    %c0_16 = arith.constant 0 : index
    %c0_17 = arith.constant 0 : index
    %34 = vector.load %arg3[%c0_16, %c0_17] : memref<2x8xf32, #tpu.memory_space<vmem>>, vector<2x8xf32>
    %cst_18 = arith.constant dense<0.000000e+00> : vector<1x8xf32>
    %35 = tpu.matmul %33, %34, %cst_18 {dimension_numbers = #tpu.dot_dimension_numbers<[1], [0], [0], [1], [0, 0, 1, 1], [], []>} : vector<1x2xf32>, vector<2x8xf32>, vector<1x8xf32> -> vector<1x8xf32>
    %c3 = arith.constant 3 : index
    %c0_19 = arith.constant 0 : index
    %36 = vector.load %arg4[%c3, %c0_19] : memref<6x8xf32, #tpu.memory_space<vmem>>, vector<1x8xf32>
    %37 = arith.addf %35, %36 : vector<1x8xf32>
    %cst_20 = arith.constant dense<0.000000e+00> : vector<1xf32>
    %38 = vector.multi_reduction <add>, %37, %cst_20 [1] : vector<1x8xf32> to vector<1xf32>
    %39 = vector.shape_cast %38 : vector<1xf32> to vector<1x1xf32>
    %cst_21 = arith.constant 8.000000e+00 : f32
    %40 = vector.broadcast %cst_21 : f32 to vector<1x1xf32>
    %41 = arith.divf %39, %40 : vector<1x1xf32>
    %42 = vector.broadcast %41 : vector<1x1xf32> to vector<1x8xf32>
    %43 = arith.subf %37, %42 : vector<1x8xf32>
    %44 = arith.mulf %43, %43 : vector<1x8xf32>
    %cst_22 = arith.constant dense<0.000000e+00> : vector<1xf32>
    %45 = vector.multi_reduction <add>, %44, %cst_22 [1] : vector<1x8xf32> to vector<1xf32>
    %46 = vector.shape_cast %45 : vector<1xf32> to vector<1x1xf32>
    %cst_23 = arith.constant 8.000000e+00 : f32
    %47 = vector.broadcast %cst_23 : f32 to vector<1x1xf32>
    %48 = arith.divf %46, %47 : vector<1x1xf32>
    %49 = vector.broadcast %41 : vector<1x1xf32> to vector<1x8xf32>
    %50 = arith.subf %37, %49 : vector<1x8xf32>
    %cst_24 = arith.constant 9.99999974E-6 : f32
    %51 = vector.broadcast %cst_24 : f32 to vector<1x1xf32>
    %52 = arith.addf %48, %51 : vector<1x1xf32>
    %53 = math.sqrt %52 : vector<1x1xf32>
    %54 = vector.broadcast %53 : vector<1x1xf32> to vector<1x8xf32>
    %55 = arith.divf %50, %54 : vector<1x8xf32>
    %c4 = arith.constant 4 : index
    %c0_25 = arith.constant 0 : index
    %56 = vector.load %arg4[%c4, %c0_25] : memref<6x8xf32, #tpu.memory_space<vmem>>, vector<1x8xf32>
    %57 = arith.mulf %55, %56 : vector<1x8xf32>
    %c5 = arith.constant 5 : index
    %c0_26 = arith.constant 0 : index
    %58 = vector.load %arg4[%c5, %c0_26] : memref<6x8xf32, #tpu.memory_space<vmem>>, vector<1x8xf32>
    %59 = arith.addf %57, %58 : vector<1x8xf32>
    %60 = math.absf %59 : vector<1x8xf32>
    %cst_27 = arith.constant 0.000000e+00 : f32
    %61 = vector.broadcast %cst_27 : f32 to vector<1x8xf32>
    %62 = arith.subf %61, %60 : vector<1x8xf32>
    %63 = math.exp %62 : vector<1x8xf32>
    %cst_28 = arith.constant 1.000000e+00 : f32
    %64 = vector.broadcast %cst_28 : f32 to vector<1x8xf32>
    %65 = arith.addf %64, %63 : vector<1x8xf32>
    %cst_29 = arith.constant 1.000000e+00 : f32
    %66 = vector.broadcast %cst_29 : f32 to vector<1x8xf32>
    %67 = arith.divf %66, %65 : vector<1x8xf32>
    %cst_30 = arith.constant 0.000000e+00 : f32
    %68 = vector.broadcast %cst_30 : f32 to vector<1x8xf32>
    %69 = arith.cmpf oge, %59, %68 : vector<1x8xf32>
    %cst_31 = arith.constant 1.000000e+00 : f32
    %70 = vector.broadcast %cst_31 : f32 to vector<1x8xf32>
    %71 = arith.subf %70, %67 : vector<1x8xf32>
    %72 = arith.select %69, %67, %71 : vector<1x8xi1>, vector<1x8xf32>
    %c0_32 = arith.constant 0 : index
    %c0_33 = arith.constant 0 : index
    %c0_34 = arith.constant 0 : index
    %73 = vector.load %arg5[%c0_32, %c0_33, %c0_34] : memref<1x1x8xf32, #tpu.memory_space<vmem>>, vector<1x1x8xf32>
    %74 = vector.shape_cast %73 : vector<1x1x8xf32> to vector<1x8xf32>
    %75 = vector.shape_cast %72 : vector<1x8xf32> to vector<1x1x8xf32>
    tpu.vector_store %arg5[%c0_32, %c0_33, %c0_34], %75 {strides = array<i32>} : memref<1x1x8xf32, #tpu.memory_space<vmem>>, vector<1x1x8xf32>,
    return
  }
  func.func @transform_0(%arg0: i32) -> (i32, i32, i32) {
    %c0_i32 = arith.constant 0 : i32
    %c0_i32_0 = arith.constant 0 : i32
    %c0_i32_1 = arith.constant 0 : i32
    return %arg0, %c0_i32, %c0_i32_0 : i32, i32, i32
  }
  func.func @transform_1(%arg0: i32) -> (i32, i32) {
    %c0_i32 = arith.constant 0 : i32
    %c0_i32_0 = arith.constant 0 : i32
    %c0_i32_1 = arith.constant 0 : i32
    return %c0_i32, %c0_i32_0 : i32, i32
  }
  func.func @transform_2(%arg0: i32) -> (i32, i32) {
    %c0_i32 = arith.constant 0 : i32
    %c0_i32_0 = arith.constant 0 : i32
    %c0_i32_1 = arith.constant 0 : i32
    return %c0_i32, %c0_i32_0 : i32, i32
  }
  func.func @transform_3(%arg0: i32) -> (i32, i32) {
    %c0_i32 = arith.constant 0 : i32
    %c0_i32_0 = arith.constant 0 : i32
    %c0_i32_1 = arith.constant 0 : i32
    return %c0_i32, %c0_i32_0 : i32, i32
  }
  func.func @transform_4(%arg0: i32) -> (i32, i32, i32) {
    %c0_i32 = arith.constant 0 : i32
    %c0_i32_0 = arith.constant 0 : i32
    %c0_i32_1 = arith.constant 0 : i32
    return %arg0, %c0_i32, %c0_i32_0 : i32, i32, i32
  }
}

</mosaic_0001>

<llo_original>
// kernel: tpu_custom_call.1
$region0: #{tpu_custom_call.1}
  #allocation0 [shape = 'u32[]', space=smem, size = 0x4, offset = 0x4, fixed_abs, tag = 'smem constant byte address 0x4 - core index']
  #allocation1 [shape = 'u32[144,128]{1,0:T(1,128)}', space=vmem, size = 0x12000, scoped, tag = 'internal scratch']
  %s0 = inlined_call_operand.vmem [shape: f32[2,64,8], index: 0, kind: input, shape index: {}]
  %s1 = inlined_call_operand.vmem [shape: f32[8,2], index: 1, kind: input, shape index: {}]
  %s2 = inlined_call_operand.vmem [shape: f32[2,8], index: 2, kind: input, shape index: {}]
  %s3 = inlined_call_operand.vmem [shape: f32[6,8], index: 3, kind: input, shape index: {}]
  %s4 = inlined_call_operand.hbm [shape: f32[2,1,8], index: 4, kind: output, shape index: {}]
  %s5 = sld [smem:[#allocation0]]
  $region49: #{tpu_custom_call.1} parent=0
    _
  %s7 = ssub.s32 1, %s5
  %s8 = scalar_select 0, %s7, %s5
  $region1: #{tpu_custom_call.1} parent=0
    #allocation2 [shape = 'u8[1024]{0}', space=vmem, size = 0x400, scoped, tag = 'output window, operand 0']
    #allocation3 [shape = 's32[2]{0}', space=sflag, size = 0x8, scoped, tag = 'scoped memory for tpu_custom_call.1']
    %9 = vsyncpa [#allocation3], 0
    %s10 = scalar_lea.sflag [#allocation3], 1
    %11 = vsyncpa %s10, 0
    loop: start=0, step=1, limit=4
    $region2: #{tpu_custom_call.1} parent=1 // loop_pre_header
      _
    $region3: #{tpu_custom_call.1} parent=1 // loop_header
      %s13 = sphi 0, %s17
      %p14 = scmp.ge.s32.totalorder %s13, 4
      %s23 = sphi 0, %s25
      %s26 = sphi 0, %s23
      %s27 = sphi 0, %s26
      %s43 = sphi 0, %s27
      %s47 = sphi 0, %s47
      %s49 = sphi 0, %s47
      %s50 = sphi 0, %s49
      %s64 = sphi 0, %s50
      %s68 = sphi 0, %s68
      %s70 = sphi 0, %s68
      %s71 = sphi 0, %s70
      %s85 = sphi 0, %s71
      %s89 = sphi 0, %s89
      %s91 = sphi 0, %s89
      %s92 = sphi 0, %s91
      %s106 = sphi 0, %s92
      %s112 = sphi 0, %s114
      %s115 = sphi 0, %s112
      %s116 = sphi 0, %s115
      %s132 = sphi 0, %s116
    $region4: #{tpu_custom_call.1} parent=1 // loop_header_branch
      %16 = sbr.rel (%p14) target = $region8
    $region5: #{tpu_custom_call.1} parent=1 // loop_body
      %s18 = ssub.s32 %s13, 1
      %s19 = ssub.s32 %s13, 2
      %s20 = sadd.s32 %s13, 1
      %s21 = ssub.s32 %s13, %s20
      %p22 = scmp.eq.s32.totalorder %s21, 0
      %s24 = sadd.s32 %s23, 1
      %s25 = scalar_select %p22, %s23, %s24
      %p28 = pneg %p22
      %p29 = scmp.eq.s32.totalorder %s13, 1
      %p30 = por %p28, %p29
      %p31 = scmp.ne.s32.totalorder %s23, %s26
      %p32 = scmp.eq.s32.totalorder %s13, 0
      %p33 = por %p31, %p32
      %p34 = scmp.ne.s32.totalorder %s23, %s26
      %p35 = scmp.eq.s32.totalorder %s18, 1
      %p36 = por %p34, %p35
      %p37 = scmp.ne.s32.totalorder %s26, %s27
      %p38 = scmp.eq.s32.totalorder %s18, 0
      %p39 = por %p37, %p38
      %p40 = scmp.ne.s32.totalorder %s26, %s27
      %p41 = scmp.eq.s32.totalorder %s19, 1
      %p42 = por %p40, %p41
      %p44 = scmp.ne.s32.totalorder %s27, %s43
      %p45 = scmp.eq.s32.totalorder %s19, 0
      %p46 = por %p44, %p45
      %s48 = sadd.s32 %s47, 1
      %p51 = scmp.eq.s32.totalorder %s13, 1
      %p52 = scmp.ne.s32.totalorder %s47, %s49
      %p53 = scmp.eq.s32.totalorder %s13, 0
      %p54 = por %p52, %p53
      %p55 = scmp.ne.s32.totalorder %s47, %s49
      %p56 = scmp.eq.s32.totalorder %s18, 1
      %p57 = por %p55, %p56
      %p58 = scmp.ne.s32.totalorder %s49, %s50
      %p59 = scmp.eq.s32.totalorder %s18, 0
      %p60 = por %p58, %p59
      %p61 = scmp.ne.s32.totalorder %s49, %s50
      %p62 = scmp.eq.s32.totalorder %s19, 1
      %p63 = por %p61, %p62
      %p65 = scmp.ne.s32.totalorder %s50, %s64
      %p66 = scmp.eq.s32.totalorder %s19, 0
      %p67 = por %p65, %p66
      %s69 = sadd.s32 %s68, 1
      %p72 = scmp.eq.s32.totalorder %s13, 1
      %p73 = scmp.ne.s32.totalorder %s68, %s70
      %p74 = scmp.eq.s32.totalorder %s13, 0
      %p75 = por %p73, %p74
      %p76 = scmp.ne.s32.totalorder %s68, %s70
      %p77 = scmp.eq.s32.totalorder %s18, 1
      %p78 = por %p76, %p77
      %p79 = scmp.ne.s32.totalorder %s70, %s71
      %p80 = scmp.eq.s32.totalorder %s18, 0
      %p81 = por %p79, %p80
      %p82 = scmp.ne.s32.totalorder %s70, %s71
      %p83 = scmp.eq.s32.totalorder %s19, 1
      %p84 = por %p82, %p83
      %p86 = scmp.ne.s32.totalorder %s71, %s85
      %p87 = scmp.eq.s32.totalorder %s19, 0
      %p88 = por %p86, %p87
      %s90 = sadd.s32 %s89, 1
      %p93 = scmp.eq.s32.totalorder %s13, 1
      %p94 = scmp.ne.s32.totalorder %s89, %s91
      %p95 = scmp.eq.s32.totalorder %s13, 0
      %p96 = por %p94, %p95
      %p97 = scmp.ne.s32.totalorder %s89, %s91
      %p98 = scmp.eq.s32.totalorder %s18, 1
      %p99 = por %p97, %p98
      %p100 = scmp.ne.s32.totalorder %s91, %s92
      %p101 = scmp.eq.s32.totalorder %s18, 0
      %p102 = por %p100, %p101
      %p103 = scmp.ne.s32.totalorder %s91, %s92
      %p104 = scmp.eq.s32.totalorder %s19, 1
      %p105 = por %p103, %p104
      %p107 = scmp.ne.s32.totalorder %s92, %s106
      %p108 = scmp.eq.s32.totalorder %s19, 0
      %p109 = por %p107, %p108
      %s110 = ssub.s32 %s13, %s20
      %p111 = scmp.eq.s32.totalorder %s110, 0
      %s113 = sadd.s32 %s112, 1
      %s114 = scalar_select %p111, %s112, %s113
      %p117 = pneg %p111
      %p118 = scmp.eq.s32.totalorder %s13, 1
      %p119 = por %p117, %p118
      %p120 = scmp.ne.s32.totalorder %s112, %s115
      %p121 = scmp.eq.s32.totalorder %s13, 0
      %p122 = por %p120, %p121
      %p123 = scmp.ne.s32.totalorder %s112, %s115
      %p124 = scmp.eq.s32.totalorder %s18, 1
      %p125 = por %p123, %p124
      %p126 = scmp.ne.s32.totalorder %s115, %s116
      %p127 = scmp.eq.s32.totalorder %s18, 0
      %p128 = por %p126, %p127
      %p129 = scmp.ne.s32.totalorder %s115, %s116
      %p130 = scmp.eq.s32.totalorder %s19, 1
      %p131 = por %p129, %p130
      %p133 = scmp.ne.s32.totalorder %s116, %s132
      %p134 = scmp.eq.s32.totalorder %s19, 0
      %p135 = por %p133, %p134
      %p136 = scmp.le.s32.totalorder 1, %s13
      %p137 = scmp.lt.s32.totalorder %s13, 3
      %p138 = pnand %p136, %p137
      %p139 = pneg %p138
      // Predicated region
      $region9: #{tpu_custom_call.1} parent=5 // pred_check
        _
      $region10: #{tpu_custom_call.1} parent=5 // pred_check_branch
        %141 = sbr.rel (%p138) target = $region12
      $region11: #{tpu_custom_call.1} parent=5 // pred_region
        %s142 = ssub.s32 %s13, 1
        // Predicated region
        $region13: #{tpu_custom_call.1} parent=11 // pred_check
          %p143 = pneg %p60
        $region14: #{tpu_custom_call.1} parent=11 // pred_check_branch
          %145 = sbr.rel (%p143) target = $region16
        $region15: #{tpu_custom_call.1} parent=11 // pred_region
          _
        $region16: #{tpu_custom_call.1} parent=11 // pred_fallthru
          _
        // Predicated region
        $region17: #{tpu_custom_call.1} parent=11 // pred_check
          %p146 = pneg %p81
        $region18: #{tpu_custom_call.1} parent=11 // pred_check_branch
          %148 = sbr.rel (%p146) target = $region20
        $region19: #{tpu_custom_call.1} parent=11 // pred_region
          _
        $region20: #{tpu_custom_call.1} parent=11 // pred_fallthru
          _
        // Predicated region
        $region21: #{tpu_custom_call.1} parent=11 // pred_check
          %p149 = pneg %p102
        $region22: #{tpu_custom_call.1} parent=11 // pred_check_branch
          %151 = sbr.rel (%p149) target = $region24
        $region23: #{tpu_custom_call.1} parent=11 // pred_region
          _
        $region24: #{tpu_custom_call.1} parent=11 // pred_fallthru
          _
      $region12: #{tpu_custom_call.1} parent=5 // pred_fallthru
        _
      %p152 = scmp.lt.s32.totalorder %s13, 2
      // Predicated region
      $region25: #{tpu_custom_call.1} parent=5 // pred_check
        %p153 = pneg %p152
      $region26: #{tpu_custom_call.1} parent=5 // pred_check_branch
        %155 = sbr.rel (%p153) target = $region28
      $region27: #{tpu_custom_call.1} parent=5 // pred_region
        // Predicated region
        $region29: #{tpu_custom_call.1} parent=27 // pred_check
          %p156 = pneg %p33
        $region30: #{tpu_custom_call.1} parent=27 // pred_check_branch
          %158 = sbr.rel (%p156) target = $region32
        $region31: #{tpu_custom_call.1} parent=27 // pred_region
          %p159 = scmp.lt.s32.totalorder %s13, 1
          %s160 = scalar_select %p159, %s13, 1
          %s161 = smul.addr %s160, 8
          %s162 = smul.addr %s161, 8
          %s163 = scalar_lea.vmem %s0, %s162
        $region32: #{tpu_custom_call.1} parent=27 // pred_fallthru
          _
      $region28: #{tpu_custom_call.1} parent=5 // pred_fallthru
        _
      %p164 = scmp.le.s32.totalorder 1, %s13
      %p165 = scmp.lt.s32.totalorder %s13, 3
      %p166 = pnand %p164, %p165
      %p167 = pneg %p166
      // Predicated region
      $region33: #{tpu_custom_call.1} parent=5 // pred_check
        _
      $region34: #{tpu_custom_call.1} parent=5 // pred_check_branch
        %169 = sbr.rel (%p166) target = $region36
      $region35: #{tpu_custom_call.1} parent=5 // pred_region
        %s170 = ssub.s32 %s13, 1
        %p171 = scmp.lt.s32.totalorder %s18, 1
        %s172 = scalar_select %p171, %s18, 1
        %s173 = smul.addr %s172, 8
        %s174 = smul.addr %s173, 8
        %s175 = scalar_lea.vmem %s0, %s174
        %p176 = pneg %p39
        %p177 = pneg %p36
        %p178 = pneg %p60
        %p179 = pneg %p57
        %p180 = pneg %p81
        %p181 = pneg %p78
        %p182 = pneg %p102
        %p183 = pneg %p99
        %p184 = pneg %p128
        %p185 = pneg %p125
        %s186 = sand.u32 %s115, 1
        %s187 = scalar_lea.sflag [#allocation3], %s186
        %s188 = sand.u32 %s115, 1
        %s189 = scalar_lea.vmem [#allocation2], %s188
        %p190 = scmp.lt.s32.totalorder %s18, 1
        %s191 = scalar_select %p190, %s18, 1
        %s192 = smul.addr %s191, 8
        %s193 = smul.addr %s192, 8
        %s194 = scalar_lea.vmem %s0, %s193
        %v195 = vld [vmem:[%s194] sm:$0xff]
        %v196 = vld [vmem:[%s194 + $0x8] sm:$0xff]
        %v197 = vld [vmem:[%s194 + $0x10] sm:$0xff]
        %v198 = vld [vmem:[%s194 + $0x18] sm:$0xff]
        %v199 = vld [vmem:[%s194 + $0x20] sm:$0xff]
        %v200 = vld [vmem:[%s194 + $0x28] sm:$0xff]
        %v201 = vld [vmem:[%s194 + $0x30] sm:$0xff]
        %v202 = vld [vmem:[%s194 + $0x38] sm:$0xff]
        %vm203 = vcmask 64512
        %v204 = vsel %vm203, %v195, 0.0
        %v205 = vsel %vm203, %v196, 0.0
        %v206 = vadd.f32 %v204, %v205
        %v207 = vsel %vm203, %v197, 0.0
        %v208 = vadd.f32 %v206, %v207
        %v209 = vsel %vm203, %v198, 0.0
        %v210 = vadd.f32 %v208, %v209
        %v211 = vsel %vm203, %v199, 0.0
        %v212 = vadd.f32 %v210, %v211
        %v213 = vsel %vm203, %v200, 0.0
        %v214 = vadd.f32 %v212, %v213
        %v215 = vsel %vm203, %v201, 0.0
        %v216 = vadd.f32 %v214, %v215
        %v217 = vsel %vm203, %v202, 0.0
        %v218 = vadd.f32 %v216, %v217
        %v219 = vrot.slane %v218, 4
        %v220 = vadd.f32 %v218, %v219
        %v221 = vrot.slane %v220, 2
        %v222 = vadd.f32 %v220, %v221
        %v223 = vrot.slane %v222, 1
        %v224 = vadd.f32 %v222, %v223
        %v225 = vrcp.pop 64.0
        %v226 = vmul.f32 %v224, %v225
        %v227 = vld [vmem:[%s1] sm:$0xff]
        %v228 = vld [vmem:[%s3] sm:$0x1]
        %v230 = vsel %vm203, %v226, 0
        %232 = vmatprep.subr.mxu0 0.0
        %233 = vmatpush1.msra.mxu0 %v227
        %234 = vmatprep.subr.mxu0 0.0
        %235 = vmatpush1.msra.mxu0 0.0
        %236 = vmatprep.subr.mxu0 0.0
        %237 = vmatpush1.msra.mxu0 0.0
        %238 = vmatprep.subr.mxu0 0.0
        %239 = vmatpush1.msra.mxu0 0.0
        %240 = vmatprep.subr.mxu0 0.0
        %241 = vmatpush1.msra.mxu0 0.0
        %242 = vmatprep.subr.mxu0 0.0
        %243 = vmatpush1.msra.mxu0 0.0
        %244 = vmatprep.subr.mxu0 0.0
        %245 = vmatpush1.msra.mxu0 0.0
        %246 = vmatprep.subr.mxu0 0.0
        %247 = vmatpush1.msra.mxu0 0.0
        %248 = vmatprep.subr.mxu0 0.0
        %249 = vmatpush1.msra.mxu0 0.0
        %250 = vmatprep.subr.mxu0 0.0
        %251 = vmatpush1.msra.mxu0 0.0
        %252 = vmatprep.subr.mxu0 0.0
        %253 = vmatpush1.msra.mxu0 0.0
        %254 = vmatprep.subr.mxu0 0.0
        %255 = vmatpush1.msra.mxu0 0.0
        %256 = vmatprep.subr.mxu0 0.0
        %257 = vmatpush1.msra.mxu0 0.0
        %258 = vmatprep.subr.mxu0 0.0
        %259 = vmatpush1.msra.mxu0 0.0
        %260 = vmatprep.subr.mxu0 0.0
        %261 = vmatpush1.msra.mxu0 0.0
        %262 = vmatprep.subr.mxu0 0.0
        %263 = vmatpush1.msra.mxu0 0.0
        %264 = vmatprep.subr.mxu0 0.0
        %265 = vmatpush1.msra.mxu0 0.0
        %266 = vmatprep.subr.mxu0 0.0
        %267 = vmatpush1.msra.mxu0 0.0
        %268 = vmatprep.subr.mxu0 0.0
        %269 = vmatpush1.msra.mxu0 0.0
        %270 = vmatprep.subr.mxu0 0.0
        %271 = vmatpush1.msra.mxu0 0.0
        %272 = vmatprep.subr.mxu0 0.0
        %273 = vmatpush1.msra.mxu0 0.0
        %274 = vmatprep.subr.mxu0 0.0
        %275 = vmatpush1.msra.mxu0 0.0
        %276 = vmatprep.subr.mxu0 0.0
        %277 = vmatpush1.msra.mxu0 0.0
        %278 = vmatprep.subr.mxu0 0.0
        %279 = vmatpush1.msra.mxu0 0.0
        %280 = vmatprep.subr.mxu0 0.0
        %281 = vmatpush1.msra.mxu0 0.0
        %282 = vmatprep.subr.mxu0 0.0
        %283 = vmatpush1.msra.mxu0 0.0
        %284 = vmatprep.subr.mxu0 0.0
        %285 = vmatpush1.msra.mxu0 0.0
        %286 = vmatprep.subr.mxu0 0.0
        %287 = vmatpush1.msra.mxu0 0.0
        %288 = vmatprep.subr.mxu0 0.0
        %289 = vmatpush1.msra.mxu0 0.0
        %290 = vmatprep.subr.mxu0 0.0
        %291 = vmatpush1.msra.mxu0 0.0
        %292 = vmatprep.subr.mxu0 0.0
        %293 = vmatpush1.msra.mxu0 0.0
        %294 = vmatprep.subr.mxu0 0.0
        %295 = vmatpush1.msra.mxu0 0.0
        %296 = vmatprep.mubr.f32.mxu0 0.0
        %297 = vmatmul.mubr.f32.gmra.mrb[0].mxu0 %v230
        %v298 = vpop.f32.mrb[0].mxu0
        %v299 = vadd.f32 %v228, %v298
        %v300 = vpop.f32.mrb[0].mxu0
        %301 = vdwg.mxu0
        %vm302 = vcmask 8192
        %v303 = vsel %vm302, %v299, 0.0
        %304 = vadd.xlane.f32.xlu0 %v303
        %v305 = vpop.xlane.xlu0 %304
        %v306 = vrcp.pop 2.0
        %v307 = vmul.f32 %v305, %v306
        %v308 = vsub.f32 %v299, %v307
        %v309 = vmul.f32 %v308, %v308
        %v310 = vsel %vm302, %v309, 0.0
        %311 = vadd.xlane.f32.xlu0 %v310
        %v312 = vpop.xlane.xlu0 %311
        %v313 = vmul.f32 %v312, %v306
        %v314 = vadd.f32 %v313, 1e-05
        %v315 = vrsqrt.pop %v314
        %v316 = vmul.f32 %v314, %v315
        %vm317 = vcmp.eq.f32.partialorder %v314, inf
        %v318 = vsel %vm317, %v314, %v316
        %vm319 = vcmp.eq.f32.partialorder %v314, 0.0
        %v320 = vand.u32 %v314, 2147483648
        %v321 = vsel %vm319, %v320, %v318
        %v322 = vrcp.pop %v321
        %v323 = vmul.f32 %v308, %v322
        %v324 = vld [vmem:[%s3 + $0x1] sm:$0x1]
        %v325 = vmul.f32 %v323, %v324
        %v326 = vld [vmem:[%s3 + $0x2] sm:$0x1]
        %v327 = vadd.f32 %v325, %v326
        %v328 = vmax.f32 %v327, 0.0
        %v329 = vld [vmem:[%s2] sm:$0x3]
        %v330 = vld [vmem:[%s3 + $0x3] sm:$0x1]
        %vm331 = vcmask 15360
        %v333 = vsel %vm331, %v328, 0
        %vm335 = vcmask 1041408
        %v337 = vsel %vm335, %v329, 0
        %339 = vmatprep.subr.mxu0 0.0
        %340 = vmatpush1.msra.mxu0 %v337
        %341 = vmatprep.subr.mxu0 0.0
        %342 = vmatpush1.msra.mxu0 0.0
        %343 = vmatprep.subr.mxu0 0.0
        %344 = vmatpush1.msra.mxu0 0.0
        %345 = vmatprep.subr.mxu0 0.0
        %346 = vmatpush1.msra.mxu0 0.0
        %347 = vmatprep.subr.mxu0 0.0
        %348 = vmatpush1.msra.mxu0 0.0
        %349 = vmatprep.subr.mxu0 0.0
        %350 = vmatpush1.msra.mxu0 0.0
        %351 = vmatprep.subr.mxu0 0.0
        %352 = vmatpush1.msra.mxu0 0.0
        %353 = vmatprep.subr.mxu0 0.0
        %354 = vmatpush1.msra.mxu0 0.0
        %355 = vmatprep.subr.mxu0 0.0
        %356 = vmatpush1.msra.mxu0 0.0
        %357 = vmatprep.subr.mxu0 0.0
        %358 = vmatpush1.msra.mxu0 0.0
        %359 = vmatprep.subr.mxu0 0.0
        %360 = vmatpush1.msra.mxu0 0.0
        %361 = vmatprep.subr.mxu0 0.0
        %362 = vmatpush1.msra.mxu0 0.0
        %363 = vmatprep.subr.mxu0 0.0
        %364 = vmatpush1.msra.mxu0 0.0
        %365 = vmatprep.subr.mxu0 0.0
        %366 = vmatpush1.msra.mxu0 0.0
        %367 = vmatprep.subr.mxu0 0.0
        %368 = vmatpush1.msra.mxu0 0.0
        %369 = vmatprep.subr.mxu0 0.0
        %370 = vmatpush1.msra.mxu0 0.0
        %371 = vmatprep.subr.mxu0 0.0
        %372 = vmatpush1.msra.mxu0 0.0
        %373 = vmatprep.subr.mxu0 0.0
        %374 = vmatpush1.msra.mxu0 0.0
        %375 = vmatprep.subr.mxu0 0.0
        %376 = vmatpush1.msra.mxu0 0.0
        %377 = vmatprep.subr.mxu0 0.0
        %378 = vmatpush1.msra.mxu0 0.0
        %379 = vmatprep.subr.mxu0 0.0
        %380 = vmatpush1.msra.mxu0 0.0
        %381 = vmatprep.subr.mxu0 0.0
        %382 = vmatpush1.msra.mxu0 0.0
        %383 = vmatprep.subr.mxu0 0.0
        %384 = vmatpush1.msra.mxu0 0.0
        %385 = vmatprep.subr.mxu0 0.0
        %386 = vmatpush1.msra.mxu0 0.0
        %387 = vmatprep.subr.mxu0 0.0
        %388 = vmatpush1.msra.mxu0 0.0
        %389 = vmatprep.subr.mxu0 0.0
        %390 = vmatpush1.msra.mxu0 0.0
        %391 = vmatprep.subr.mxu0 0.0
        %392 = vmatpush1.msra.mxu0 0.0
        %393 = vmatprep.subr.mxu0 0.0
        %394 = vmatpush1.msra.mxu0 0.0
        %395 = vmatprep.subr.mxu0 0.0
        %396 = vmatpush1.msra.mxu0 0.0
        %397 = vmatprep.subr.mxu0 0.0
        %398 = vmatpush1.msra.mxu0 0.0
        %399 = vmatprep.subr.mxu0 0.0
        %400 = vmatpush1.msra.mxu0 0.0
        %401 = vmatprep.subr.mxu0 0.0
        %402 = vmatpush1.msra.mxu0 0.0
        %403 = vmatprep.mubr.f32.mxu0 0.0
        %404 = vmatmul.mubr.f32.gmra.mrb[0].mxu0 %v333
        %v405 = vpop.f32.mrb[0].mxu0
        %v406 = vadd.f32 %v330, %v405
        %v407 = vpop.f32.mrb[0].mxu0
        %408 = vdwg.mxu0
        %vm409 = vcmask 57344
        %v410 = vsel %vm409, %v406, 0.0
        %411 = vadd.xlane.f32.xlu0 %v410
        %v412 = vpop.xlane.xlu0 %411
        %v413 = vrcp.pop 8.0
        %v414 = vmul.f32 %v412, %v413
        %v415 = vsub.f32 %v406, %v414
        %v416 = vmul.f32 %v415, %v415
        %v417 = vsel %vm409, %v416, 0.0
        %418 = vadd.xlane.f32.xlu0 %v417
        %v419 = vpop.xlane.xlu0 %418
        %v420 = vmul.f32 %v419, %v413
        %v421 = vadd.f32 %v420, 1e-05
        %v422 = vrsqrt.pop %v421
        %v423 = vmul.f32 %v421, %v422
        %vm424 = vcmp.eq.f32.partialorder %v421, inf
        %v425 = vsel %vm424, %v421, %v423
        %vm426 = vcmp.eq.f32.partialorder %v421, 0.0
        %v427 = vand.u32 %v421, 2147483648
        %v428 = vsel %vm426, %v427, %v425
        %v429 = vrcp.pop %v428
        %v430 = vmul.f32 %v415, %v429
        %v431 = vld [vmem:[%s3 + $0x4] sm:$0x1]
        %v432 = vmul.f32 %v430, %v431
        %v433 = vld [vmem:[%s3 + $0x5] sm:$0x1]
        %v434 = vadd.f32 %v432, %v433
        %v435 = vand.u32 2147483647, %v434
        %v436 = vsub.f32 0.0, %v435
        %v437 = vmul.f32 %v436, 1.442695
        %v438 = vpow.pop %v437
        %v439 = vadd.f32 %v438, 1.0
        %v440 = vrcp.pop %v439
        %v441 = vmul.f32 1.0, %v440
        %vm442 = vcmp.ge.f32.partialorder %v434, 0.0
        %v443 = vsub.f32 1.0, %v441
        %v444 = vsel %vm442, %v441, %v443
        %445 = vst.msk [vmem:[%s189] sm:$0x1] %vm409, %v444
        %s446 = sand.u32 %s115, 1
        %s447 = scalar_lea.sflag [#allocation3], %s446
        %s448 = sand.u32 %s115, 1
        %s449 = scalar_lea.vmem [#allocation2], %s448
        // Predicated region
        $region37: #{tpu_custom_call.1} parent=35 // pred_check
          %p450 = pneg %p125
        $region38: #{tpu_custom_call.1} parent=35 // pred_check_branch
          %452 = sbr.rel (%p450) target = $region40
        $region39: #{tpu_custom_call.1} parent=35 // pred_region
          %s454 = ssub.s32 16, 16
          %455 = vsyncadd %s447, %s454
          %s456 = smul.addr %s18, 16
          %s457 = scalar_lea.hbm %s4, %s456
          %s459 = sshll.u32 %s449, 4
          %s460 = int_to_ptr.vmem [resolvable:$true] %s459
          %462 = dma.vmem_to_hbm [thread:$0]  %s460, 16, %s457, %s447
        $region40: #{tpu_custom_call.1} parent=35 // pred_fallthru
          _
      $region36: #{tpu_custom_call.1} parent=5 // pred_fallthru
        _
      %p463 = scmp.le.s32.totalorder 2, %s13
      // Predicated region
      $region41: #{tpu_custom_call.1} parent=5 // pred_check
        %p464 = pneg %p463
      $region42: #{tpu_custom_call.1} parent=5 // pred_check_branch
        %466 = sbr.rel (%p464) target = $region44
      $region43: #{tpu_custom_call.1} parent=5 // pred_region
        %s467 = ssub.s32 %s13, 2
        // Predicated region
        $region45: #{tpu_custom_call.1} parent=43 // pred_check
          %p468 = pneg %p131
        $region46: #{tpu_custom_call.1} parent=43 // pred_check_branch
          %470 = sbr.rel (%p468) target = $region48
        $region47: #{tpu_custom_call.1} parent=43 // pred_region
          %s471 = sand.u32 %s116, 1
          %s472 = scalar_lea.sflag [#allocation3], %s471
          %s473 = sand.u32 %s116, 1
          %s474 = scalar_lea.vmem [#allocation2], %s473
          %475 = dma.done %s472, 16
        $region48: #{tpu_custom_call.1} parent=43 // pred_fallthru
          _
      $region44: #{tpu_custom_call.1} parent=5 // pred_fallthru
        _
    $region6: #{tpu_custom_call.1} parent=1 // loop_footer
      %s17 = sadd.s32 1, %s13
    $region7: #{tpu_custom_call.1} parent=1 // loop_footer_branch
      %12 = sbr.rel target = $region3
    $region8: #{tpu_custom_call.1} parent=1 // loop_exit
      _
    %476 = vsyncpa [#allocation3], 1
    %s477 = scalar_lea.sflag [#allocation3], 1
    %478 = vsyncpa %s477, 1

</llo_original>
